<compile_context>
chip_gen: v7x
topology: tpu7x:2x2x1
jax: 0.10.0
libtpu: 0.0.40
codegen_flags: <defaults>
</compile_context>

<pallas_src>
import functools

import jax
import jax.numpy as jnp
from jax.experimental import pallas as pl
from jax.experimental.pallas import tpu as pltpu

N_CLASSES = 9
NEG_SLOPE = 0.01  # torch.nn.LeakyReLU default negative_slope


def _round_up(x, m):
    return (x + m - 1) // m * m


def layer2units(n_linear, layer_i):
    return 2 ** (n_linear - layer_i - 1) * 64


def _leaky_relu(x):
    return jnp.where(x >= 0, x, NEG_SLOPE * x)


# ----------------------------------------------------------------------------
# Kernel
#   refs = (x, w0, w_mid..., w_combo, out, [acc])
#   non-K-tiled: grid = (M tiles,)           -- w0 resident, single big dot
#   K-tiled    : grid = (M tiles, K tiles)   -- f32 VMEM accumulator, epilogue
#                                               at the last K step
# ----------------------------------------------------------------------------
def _epilogue(h, w_refs, out_ref):
    if len(w_refs) == 1:
        # Single Linear: no activation, h is already the prediction.
        out_ref[...] = h.astype(out_ref.dtype)
        return
    h = _leaky_relu(h)                         # Dropout(p=0) == identity
    # TODO(synk): dropout with p > 0 (training mode) would need pltpu.prng_*.
    for w_ref in w_refs[1:-1]:
        h = _leaky_relu(jnp.dot(h, w_ref[...],
                                preferred_element_type=jnp.float32))
    # Last weight is the prebuilt [I_feat | w_last | 0] combo: one MXU op gives
    # the lane-dense [feat | pred] slab (epilogue stays in f32 for accuracy).
    out_ref[...] = jnp.dot(h, w_refs[-1][...],
                           preferred_element_type=jnp.float32
                           ).astype(out_ref.dtype)


def _mlp_kernel(*refs, n_w, k_tiled, compute_dtype):
    x_ref = refs[0]
    w_refs = refs[1:1 + n_w]
    out_ref = refs[1 + n_w]

    x = x_ref[...].astype(compute_dtype)       # in-kernel cast: no extra HBM pass
    partial = jnp.dot(x, w_refs[0][...], preferred_element_type=jnp.float32)

    if not k_tiled:
        _epilogue(partial, w_refs, out_ref)
        return

    acc_ref = refs[2 + n_w]
    k = pl.program_id(1)

    @pl.when(k == 0)
    def _():
        acc_ref[...] = jnp.zeros_like(acc_ref)

    acc_ref[...] += partial

    @pl.when(k == pl.num_programs(1) - 1)
    def _():
        _epilogue(acc_ref[...], w_refs, out_ref)


# ----------------------------------------------------------------------------
# Wrapper
# ----------------------------------------------------------------------------
def mlp_pallas(x_flat, kweights, *, compute_dtype=jnp.bfloat16,
               max_tm=256, vmem_budget=24 * 1024 * 1024):
    """x_flat: (B, n_input).  kweights: output of prepare_params (K-major)."""
    M, K = x_flat.shape
    n_w = len(kweights)
    w0 = kweights[0]
    Kp = w0.shape[0]
    H1 = w0.shape[1]
    out_width = kweights[-1].shape[1]
    assert Kp == _round_up(K, 128)

    x_it = x_flat.dtype.itemsize
    w_it = w0.dtype.itemsize

    # --- M tiling: minimize padding; >=2 tiles for big batches (v7x 2 TCs) ---
    Mp8 = _round_up(max(M, 1), 8)
    if Mp8 <= max_tm:
        tm = _round_up((Mp8 + 1) // 2, 8) if Mp8 >= 256 else Mp8
    else:
        cands = [t for t in (256, 128, 64) if t <= max_tm] or [_round_up(max_tm, 8)]
        tm = min(cands, key=lambda t: (_round_up(Mp8, t) - Mp8, -t))
    Mp = _round_up(Mp8, tm)

    # --- K tiling: prefer ONE resident K block (no K grid axis) -------------
    small_bytes = sum(2 * int(w.size) * w.dtype.itemsize for w in kweights[1:])
    small_bytes += 2 * tm * out_width * 4            # output double buffer
    avail = vmem_budget - small_bytes
    per_k128 = 2 * tm * 128 * x_it + 2 * 128 * H1 * w_it
    tk_max = max(avail // per_k128, 1) * 128
    if Kp <= tk_max:
        tk = Kp
    else:  # largest multiple of 128 that divides Kp (128 always divides Kp)
        tk = max(t for t in range(128, tk_max + 1, 128) if Kp % t == 0)
    k_tiled = tk < Kp

    # --- pad x only when actually needed ------------------------------------
    x_p = x_flat
    if Mp != M or Kp != K:
        x_p = jnp.pad(x_flat, ((0, Mp - M), (0, Kp - K)))

    out_shape = jax.ShapeDtypeStruct((Mp, out_width), jnp.float32)

    if not k_tiled:
        grid = (Mp // tm,)
        in_specs = [pl.BlockSpec((tm, Kp), lambda i: (i, 0)),
                    pl.BlockSpec((Kp, H1), lambda i: (0, 0))]
        for w in kweights[1:]:
            in_specs.append(pl.BlockSpec(w.shape, lambda i: (0, 0)))
        out_specs = pl.BlockSpec((tm, out_width), lambda i: (i, 0))
        scratch = []
        dims = ("parallel",)
    else:
        grid = (Mp // tm, Kp // tk)
        in_specs = [pl.BlockSpec((tm, tk), lambda i, k: (i, k)),
                    pl.BlockSpec((tk, H1), lambda i, k: (k, 0))]
        for w in kweights[1:]:
            in_specs.append(pl.BlockSpec(w.shape, lambda i, k: (0, 0)))
        out_specs = pl.BlockSpec((tm, out_width), lambda i, k: (i, 0))
        scratch = [pltpu.VMEM((tm, H1), jnp.float32)]
        dims = ("parallel", "arbitrary")

    out = pl.pallas_call(
        functools.partial(_mlp_kernel, n_w=n_w, k_tiled=k_tiled,
                          compute_dtype=compute_dtype),
        out_shape=out_shape,
        grid_spec=pltpu.PrefetchScalarGridSpec(
            num_scalar_prefetch=0,
            grid=grid,
            in_specs=in_specs,
            out_specs=out_specs,
            scratch_shapes=scratch,
        ),
        compiler_params=pltpu.CompilerParams(
            dimension_semantics=dims,
            vmem_limit_bytes=32 * 1024 * 1024),
    )(x_p, *kweights)

    return out[:M]


# ----------------------------------------------------------------------------
# One-time parameter preprocessing (hoisted out of the forward pass)
# ----------------------------------------------------------------------------
def prepare_params(params, *, compute_dtype=jnp.bfloat16):
    """torch-layout (out,in) weights -> kernel weights + static metadata.

    * first weight: transposed to K-major, K padded to a multiple of 128,
      cast to `compute_dtype` (bf16 by default; f32 for strict parity).
    * middle weights: transposed, kept f32 (epilogue runs in f32).
    * last weight: fused with an identity into a lane-dense (feat, 128) combo
      so the kernel writes a single [feat | pred | 0] slab.
    """
    ws = [jnp.asarray(w, jnp.float32) for w in params["weights"]]
    n_w = len(ws)
    n_out = ws[-1].shape[0]
    K = ws[0].shape[1]
    Kp = _round_up(K, 128)

    w0 = ws[0].T                                   # (K, H1) K-major
    if Kp != K:
        w0 = jnp.pad(w0, ((0, Kp - K), (0, 0)))
    w0 = w0.astype(compute_dtype)

    if n_w == 1:
        meta = dict(n_out=n_out, feat_dim=None, compute_dtype=compute_dtype)
        return [w0], meta

    mids = [w.T for w in ws[1:-1]]                 # f32
    w_last = ws[-1].T                              # (feat_dim, n_out)
    feat_dim = w_last.shape[0]
    out_width = _round_up(feat_dim + n_out, 128)
    combo = jnp.concatenate(
        [jnp.eye(feat_dim, dtype=jnp.float32),
         w_last,
         jnp.zeros((feat_dim, out_width - feat_dim - n_out), jnp.float32)],
        axis=1)
    meta = dict(n_out=n_out, feat_dim=feat_dim, compute_dtype=compute_dtype)
    return [w0] + mids + [combo], meta


# ----------------------------------------------------------------------------
# Module-level forward + deterministic init (PyTorch Linear layout, no bias)
# ----------------------------------------------------------------------------
def mlp_forward(kweights, x, *, meta, return_feat=False):
    B = x.shape[0]
    x_flat = x.reshape(B, -1)
    out = mlp_pallas(x_flat, kweights, compute_dtype=meta["compute_dtype"])
    n_out = meta["n_out"]
    feat_dim = meta["feat_dim"]
    if feat_dim is None:               # n_linear == 1: layers[:-1] is empty
        pred = out[:, :n_out]
        feat = x_flat
    else:
        feat = out[:, :feat_dim]
        pred = out[:, feat_dim:feat_dim + n_out]
    if return_feat:
        return pred, feat
    return pred


def init_mlp(key, n_input, n_classes=N_CLASSES, n_linear=2):
    dims = []
    if n_linear == 1:
        dims.append((n_classes, n_input))
    else:
        dims.append((layer2units(n_linear, 1), n_input))
        for i in range(2, n_linear):
            dims.append((layer2units(n_linear, i), layer2units(n_linear, i - 1)))
        dims.append((n_classes, 64))
    keys = jax.random.split(key, len(dims))
    weights = [jax.random.normal(k, d, jnp.float32) / jnp.sqrt(d[1])
               for k, d in zip(keys, dims)]
    return {"weights": weights}


if __name__ == "__main__":
    key = jax.random.PRNGKey(0)
    k2, k3, k1, kx = jax.random.split(key, 4)

    B, C, H, W = 2, 4, 16, 16
    n_input = C * H * W
    x = jax.random.normal(kx, (B, C, H, W), jnp.float32)

    def ref_forward(params, xin):
        h = xin.reshape(xin.shape[0], -1)
        ws = params["weights"]
        for w in ws[:-1]:
            z = jnp.dot(h, w.T, precision=jax.lax.Precision.HIGHEST)
            h = jnp.where(z >= 0, z, NEG_SLOPE * z)
        return jnp.dot(h, ws[-1].T, precision=jax.lax.Precision.HIGHEST), h

    # ---- default config (n_linear=2), bf16-streamed first layer -------------
    params2 = init_mlp(k2, n_input, n_classes=N_CLASSES, n_linear=2)
    kw2, meta2 = prepare_params(params2)               # bf16 w0, f32 accumulate
    fwd2 = jax.jit(functools.partial(mlp_forward, meta=meta2, return_feat=True))
    pred, feat = fwd2(kw2, x)
    jax.block_until_ready((pred, feat))
    assert pred.shape == (B, N_CLASSES) and feat.shape == (B, 64)
    assert bool(jnp.all(jnp.isfinite(pred))) and bool(jnp.all(jnp.isfinite(feat)))
    rp, rf = ref_forward(params2, x)
    # accuracy gate for the bf16-operand fast path
    assert jnp.allclose(pred, rp, atol=5e-2, rtol=5e-2)
    assert jnp.allclose(feat, rf, atol=5e-2, rtol=5e-2)

    # ---- strict-parity f32 path ---------------------------------------------
    kw2f, meta2f = prepare_params(params2, compute_dtype=jnp.float32)
    predf, featf = jax.jit(functools.partial(mlp_forward, meta=meta2f,
                                             return_feat=True))(kw2f, x)
    jax.block_until_ready((predf, featf))
    assert jnp.allclose(predf, rp, atol=1e-3, rtol=1e-3)
    assert jnp.allclose(featf, rf, atol=1e-3, rtol=1e-3)

    # ---- deeper net (n_linear=3: 1024->128->64->9), pred-only ---------------
    params3 = init_mlp(k3, n_input, n_classes=N_CLASSES, n_linear=3)
    kw3, meta3 = prepare_params(params3)
    pred3 = jax.jit(functools.partial(mlp_forward, meta=meta3))(kw3, x)
    jax.block_until_ready(pred3)
    rp3, _ = ref_forward(params3, x)
    assert pred3.shape == (B, N_CLASSES)
    assert jnp.allclose(pred3, rp3, atol=5e-2, rtol=5e-2)

    # ---- single-Linear path (n_linear=1) ------------------------------------
    params1 = init_mlp(k1, n_input, n_classes=N_CLASSES, n_linear=1)
    kw1, meta1 = prepare_params(params1)
    pred1, feat1 = jax.jit(functools.partial(mlp_forward, meta=meta1,
                                             return_feat=True))(kw1, x)
    jax.block_until_ready((pred1, feat1))
    rp1, _ = ref_forward(params1, x)
    assert pred1.shape == (B, N_CLASSES)
    assert jnp.allclose(pred1, rp1, atol=5e-2, rtol=5e-2)
    assert jnp.allclose(feat1, x.reshape(B, -1))

    print("KERNEL_OK")
</pallas_src>

<mosaic_0001>
module attributes {stable_mosaic.version = 11 : i64} {
  func.func @_mlp_kernel(%arg0: i32, %arg1: memref<8x1024xf32, #tpu.memory_space<vmem>>, %arg2: memref<1024x64xbf16, #tpu.memory_space<vmem>>, %arg3: memref<64x128xf32, #tpu.memory_space<vmem>>, %arg4: memref<8x128xf32, #tpu.memory_space<vmem>>) attributes {dimension_semantics = [#tpu.dimension_semantics<parallel>], iteration_bounds = array<i64: 1>, scalar_prefetch = 0 : i64, scratch_operands = 0 : i64, tpu.core_type = #tpu.core_type<tc>, window_params = [{transform_indices = @transform_0, window_bounds = array<i64: 8, 1024>}, {pipeline_mode = #tpu.pipeline_mode<synchronous>, transform_indices = @transform_1, window_bounds = array<i64: 1024, 64>}, {pipeline_mode = #tpu.pipeline_mode<synchronous>, transform_indices = @transform_2, window_bounds = array<i64: 64, 128>}, {transform_indices = @transform_3, window_bounds = array<i64: 8, 128>}]} {
    %c0 = arith.constant 0 : index
    %c0_0 = arith.constant 0 : index
    %0 = vector.load %arg1[%c0, %c0_0] : memref<8x1024xf32, #tpu.memory_space<vmem>>, vector<8x1024xf32>
    %1 = arith.truncf %0 : vector<8x1024xf32> to vector<8x1024xbf16>
    %c0_1 = arith.constant 0 : index
    %c0_2 = arith.constant 0 : index
    %2 = vector.load %arg2[%c0_1, %c0_2] : memref<1024x64xbf16, #tpu.memory_space<vmem>>, vector<1024x64xbf16>
    %cst = arith.constant dense<0.000000e+00> : vector<8x64xf32>
    %3 = tpu.matmul %1, %2, %cst {dimension_numbers = #tpu.dot_dimension_numbers<[1], [0], [0], [1], [0, 0, 1, 1], [], []>} : vector<8x1024xbf16>, vector<1024x64xbf16>, vector<8x64xf32> -> vector<8x64xf32>
    %cst_3 = arith.constant 0.000000e+00 : f32
    %4 = vector.broadcast %cst_3 : f32 to vector<8x64xf32>
    %5 = arith.cmpf oge, %3, %4 : vector<8x64xf32>
    %cst_4 = arith.constant 0.00999999977 : f32
    %6 = vector.broadcast %cst_4 : f32 to vector<8x64xf32>
    %7 = arith.mulf %6, %3 : vector<8x64xf32>
    %8 = arith.select %5, %3, %7 : vector<8x64xi1>, vector<8x64xf32>
    %c0_5 = arith.constant 0 : index
    %c0_6 = arith.constant 0 : index
    %9 = vector.load %arg3[%c0_5, %c0_6] : memref<64x128xf32, #tpu.memory_space<vmem>>, vector<64x128xf32>
    %cst_7 = arith.constant dense<0.000000e+00> : vector<8x128xf32>
    %10 = tpu.matmul %8, %9, %cst_7 {dimension_numbers = #tpu.dot_dimension_numbers<[1], [0], [0], [1], [0, 0, 1, 1], [], []>} : vector<8x64xf32>, vector<64x128xf32>, vector<8x128xf32> -> vector<8x128xf32>
    %c0_8 = arith.constant 0 : index
    %c0_9 = arith.constant 0 : index
    %11 = vector.load %arg4[%c0_8, %c0_9] : memref<8x128xf32, #tpu.memory_space<vmem>>, vector<8x128xf32>
    tpu.vector_store %arg4[%c0_8, %c0_9], %10 {strides = array<i32>} : memref<8x128xf32, #tpu.memory_space<vmem>>, vector<8x128xf32>,
    return
  }
  func.func @transform_0(%arg0: i32) -> (i32, i32) {
    %c0_i32 = arith.constant 0 : i32
    %c0_i32_0 = arith.constant 0 : i32
    return %arg0, %c0_i32 : i32, i32
  }
  func.func @transform_1(%arg0: i32) -> (i32, i32) {
    %c0_i32 = arith.constant 0 : i32
    %c0_i32_0 = arith.constant 0 : i32
    %c0_i32_1 = arith.constant 0 : i32
    return %c0_i32, %c0_i32_0 : i32, i32
  }
  func.func @transform_2(%arg0: i32) -> (i32, i32) {
    %c0_i32 = arith.constant 0 : i32
    %c0_i32_0 = arith.constant 0 : i32
    %c0_i32_1 = arith.constant 0 : i32
    return %c0_i32, %c0_i32_0 : i32, i32
  }
  func.func @transform_3(%arg0: i32) -> (i32, i32) {
    %c0_i32 = arith.constant 0 : i32
    %c0_i32_0 = arith.constant 0 : i32
    return %arg0, %c0_i32 : i32, i32
  }
}

</mosaic_0001>

<llo_original>
// kernel: mlp_forward.1
$region0: #{mlp_forward.1}
  #allocation0 [shape = 'u32[]', space=smem, size = 0x4, offset = 0x4, fixed_abs, tag = 'smem constant byte address 0x4 - core index']
  #allocation1 [shape = 'u32[144,128]{1,0:T(1,128)}', space=vmem, size = 0x12000, scoped, tag = 'internal scratch']
  %s0 = inlined_call_operand.vmem [shape: f32[8,1024], index: 0, kind: input, shape index: {}]
  %s1 = inlined_call_operand.vmem [shape: bf16[1024,64], index: 1, kind: input, shape index: {}]
  %s2 = inlined_call_operand.vmem [shape: f32[64,128], index: 2, kind: input, shape index: {}]
  %s3 = inlined_call_operand.vmem [shape: f32[8,128], index: 3, kind: output, shape index: {}]
  %s4 = sld [smem:[#allocation0]]
  $region22: #{mlp_forward.1} parent=0
    _
  %s6 = ssub.s32 1, %s4
  %s7 = scalar_select 0, %s6, %s4
  // Predicated region
  $region2: #{mlp_forward.1} parent=0 // pred_check
    _
  $region3: #{mlp_forward.1} parent=0 // pred_check_branch
    %9 = sbr.rel (0) target = $region5
  $region4: #{mlp_forward.1} parent=0 // pred_region
    _
  $region5: #{mlp_forward.1} parent=0 // pred_fallthru
    _
  // Predicated region
  $region6: #{mlp_forward.1} parent=0 // pred_check
    _
  $region7: #{mlp_forward.1} parent=0 // pred_check_branch
    %11 = sbr.rel (0) target = $region9
  $region8: #{mlp_forward.1} parent=0 // pred_region
    _
  $region9: #{mlp_forward.1} parent=0 // pred_fallthru
    _
  // Predicated region
  $region10: #{mlp_forward.1} parent=0 // pred_check
    _
  $region11: #{mlp_forward.1} parent=0 // pred_check_branch
    %13 = sbr.rel (0) target = $region13
  $region12: #{mlp_forward.1} parent=0 // pred_region
    _
  $region13: #{mlp_forward.1} parent=0 // pred_fallthru
    _
  %v15 = vld [vmem:[%s0] sm:$0xff]
  %v16 = vld [vmem:[%s0 + $0x8] sm:$0xff]
  %v17 = vld [vmem:[%s0 + $0x10] sm:$0xff]
  %v18 = vld [vmem:[%s0 + $0x18] sm:$0xff]
  %v19 = vld [vmem:[%s0 + $0x20] sm:$0xff]
  %v20 = vld [vmem:[%s0 + $0x28] sm:$0xff]
  %v21 = vld [vmem:[%s0 + $0x30] sm:$0xff]
  %v22 = vld [vmem:[%s0 + $0x38] sm:$0xff]
  %v23 = vpack.c.bf16 %v15, %v15
  %v24 = vpack.c.bf16 %v16, %v16
  %v25 = vpack.c.bf16 %v17, %v17
  %v26 = vpack.c.bf16 %v18, %v18
  %v27 = vpack.c.bf16 %v19, %v19
  %v28 = vpack.c.bf16 %v20, %v20
  %v29 = vpack.c.bf16 %v21, %v21
  %v30 = vpack.c.bf16 %v22, %v22
  %v31 = vld [vmem:[%s1] sm:$0xf]
  %v32 = vld [vmem:[%s1 + $0x4] sm:$0xf]
  %v33 = vld [vmem:[%s1 + $0x8] sm:$0xf]
  %v34 = vld [vmem:[%s1 + $0xc] sm:$0xf]
  %v35 = vld [vmem:[%s1 + $0x10] sm:$0xf]
  %v36 = vld [vmem:[%s1 + $0x14] sm:$0xf]
  %v37 = vld [vmem:[%s1 + $0x18] sm:$0xf]
  %v38 = vld [vmem:[%s1 + $0x1c] sm:$0xf]
  %v39 = vld [vmem:[%s1 + $0x20] sm:$0xf]
  %v40 = vld [vmem:[%s1 + $0x24] sm:$0xf]
  %v41 = vld [vmem:[%s1 + $0x28] sm:$0xf]
  %v42 = vld [vmem:[%s1 + $0x2c] sm:$0xf]
  %v43 = vld [vmem:[%s1 + $0x30] sm:$0xf]
  %v44 = vld [vmem:[%s1 + $0x34] sm:$0xf]
  %v45 = vld [vmem:[%s1 + $0x38] sm:$0xf]
  %v46 = vld [vmem:[%s1 + $0x3c] sm:$0xf]
  %v47 = vld [vmem:[%s1 + $0x40] sm:$0xf]
  %v48 = vld [vmem:[%s1 + $0x44] sm:$0xf]
  %v49 = vld [vmem:[%s1 + $0x48] sm:$0xf]
  %v50 = vld [vmem:[%s1 + $0x4c] sm:$0xf]
  %v51 = vld [vmem:[%s1 + $0x50] sm:$0xf]
  %v52 = vld [vmem:[%s1 + $0x54] sm:$0xf]
  %v53 = vld [vmem:[%s1 + $0x58] sm:$0xf]
  %v54 = vld [vmem:[%s1 + $0x5c] sm:$0xf]
  %v55 = vld [vmem:[%s1 + $0x60] sm:$0xf]
  %v56 = vld [vmem:[%s1 + $0x64] sm:$0xf]
  %v57 = vld [vmem:[%s1 + $0x68] sm:$0xf]
  %v58 = vld [vmem:[%s1 + $0x6c] sm:$0xf]
  %v59 = vld [vmem:[%s1 + $0x70] sm:$0xf]
  %v60 = vld [vmem:[%s1 + $0x74] sm:$0xf]
  %v61 = vld [vmem:[%s1 + $0x78] sm:$0xf]
  %v62 = vld [vmem:[%s1 + $0x7c] sm:$0xf]
  %v63 = vld [vmem:[%s1 + $0x80] sm:$0xf]
  %v64 = vld [vmem:[%s1 + $0x84] sm:$0xf]
  %v65 = vld [vmem:[%s1 + $0x88] sm:$0xf]
  %v66 = vld [vmem:[%s1 + $0x8c] sm:$0xf]
  %v67 = vld [vmem:[%s1 + $0x90] sm:$0xf]
  %v68 = vld [vmem:[%s1 + $0x94] sm:$0xf]
  %v69 = vld [vmem:[%s1 + $0x98] sm:$0xf]
  %v70 = vld [vmem:[%s1 + $0x9c] sm:$0xf]
  %v71 = vld [vmem:[%s1 + $0xa0] sm:$0xf]
  %v72 = vld [vmem:[%s1 + $0xa4] sm:$0xf]
  %v73 = vld [vmem:[%s1 + $0xa8] sm:$0xf]
  %v74 = vld [vmem:[%s1 + $0xac] sm:$0xf]
  %v75 = vld [vmem:[%s1 + $0xb0] sm:$0xf]
  %v76 = vld [vmem:[%s1 + $0xb4] sm:$0xf]
  %v77 = vld [vmem:[%s1 + $0xb8] sm:$0xf]
  %v78 = vld [vmem:[%s1 + $0xbc] sm:$0xf]
  %v79 = vld [vmem:[%s1 + $0xc0] sm:$0xf]
  %v80 = vld [vmem:[%s1 + $0xc4] sm:$0xf]
  %v81 = vld [vmem:[%s1 + $0xc8] sm:$0xf]
  %v82 = vld [vmem:[%s1 + $0xcc] sm:$0xf]
  %v83 = vld [vmem:[%s1 + $0xd0] sm:$0xf]
  %v84 = vld [vmem:[%s1 + $0xd4] sm:$0xf]
  %v85 = vld [vmem:[%s1 + $0xd8] sm:$0xf]
  %v86 = vld [vmem:[%s1 + $0xdc] sm:$0xf]
  %v87 = vld [vmem:[%s1 + $0xe0] sm:$0xf]
  %v88 = vld [vmem:[%s1 + $0xe4] sm:$0xf]
  %v89 = vld [vmem:[%s1 + $0xe8] sm:$0xf]
  %v90 = vld [vmem:[%s1 + $0xec] sm:$0xf]
  %v91 = vld [vmem:[%s1 + $0xf0] sm:$0xf]
  %v92 = vld [vmem:[%s1 + $0xf4] sm:$0xf]
  %v93 = vld [vmem:[%s1 + $0xf8] sm:$0xf]
  %v94 = vld [vmem:[%s1 + $0xfc] sm:$0xf]
  %v95 = vld [vmem:[%s1 + $0x100] sm:$0xf]
  %v96 = vld [vmem:[%s1 + $0x104] sm:$0xf]
  %v97 = vld [vmem:[%s1 + $0x108] sm:$0xf]
  %v98 = vld [vmem:[%s1 + $0x10c] sm:$0xf]
  %v99 = vld [vmem:[%s1 + $0x110] sm:$0xf]
  %v100 = vld [vmem:[%s1 + $0x114] sm:$0xf]
  %v101 = vld [vmem:[%s1 + $0x118] sm:$0xf]
  %v102 = vld [vmem:[%s1 + $0x11c] sm:$0xf]
  %v103 = vld [vmem:[%s1 + $0x120] sm:$0xf]
  %v104 = vld [vmem:[%s1 + $0x124] sm:$0xf]
  %v105 = vld [vmem:[%s1 + $0x128] sm:$0xf]
  %v106 = vld [vmem:[%s1 + $0x12c] sm:$0xf]
  %v107 = vld [vmem:[%s1 + $0x130] sm:$0xf]
  %v108 = vld [vmem:[%s1 + $0x134] sm:$0xf]
  %v109 = vld [vmem:[%s1 + $0x138] sm:$0xf]
  %v110 = vld [vmem:[%s1 + $0x13c] sm:$0xf]
  %v111 = vld [vmem:[%s1 + $0x140] sm:$0xf]
  %v112 = vld [vmem:[%s1 + $0x144] sm:$0xf]
  %v113 = vld [vmem:[%s1 + $0x148] sm:$0xf]
  %v114 = vld [vmem:[%s1 + $0x14c] sm:$0xf]
  %v115 = vld [vmem:[%s1 + $0x150] sm:$0xf]
  %v116 = vld [vmem:[%s1 + $0x154] sm:$0xf]
  %v117 = vld [vmem:[%s1 + $0x158] sm:$0xf]
  %v118 = vld [vmem:[%s1 + $0x15c] sm:$0xf]
  %v119 = vld [vmem:[%s1 + $0x160] sm:$0xf]
  %v120 = vld [vmem:[%s1 + $0x164] sm:$0xf]
  %v121 = vld [vmem:[%s1 + $0x168] sm:$0xf]
  %v122 = vld [vmem:[%s1 + $0x16c] sm:$0xf]
  %v123 = vld [vmem:[%s1 + $0x170] sm:$0xf]
  %v124 = vld [vmem:[%s1 + $0x174] sm:$0xf]
  %v125 = vld [vmem:[%s1 + $0x178] sm:$0xf]
  %v126 = vld [vmem:[%s1 + $0x17c] sm:$0xf]
  %v127 = vld [vmem:[%s1 + $0x180] sm:$0xf]
  %v128 = vld [vmem:[%s1 + $0x184] sm:$0xf]
  %v129 = vld [vmem:[%s1 + $0x188] sm:$0xf]
  %v130 = vld [vmem:[%s1 + $0x18c] sm:$0xf]
  %v131 = vld [vmem:[%s1 + $0x190] sm:$0xf]
  %v132 = vld [vmem:[%s1 + $0x194] sm:$0xf]
  %v133 = vld [vmem:[%s1 + $0x198] sm:$0xf]
  %v134 = vld [vmem:[%s1 + $0x19c] sm:$0xf]
  %v135 = vld [vmem:[%s1 + $0x1a0] sm:$0xf]
  %v136 = vld [vmem:[%s1 + $0x1a4] sm:$0xf]
  %v137 = vld [vmem:[%s1 + $0x1a8] sm:$0xf]
  %v138 = vld [vmem:[%s1 + $0x1ac] sm:$0xf]
  %v139 = vld [vmem:[%s1 + $0x1b0] sm:$0xf]
  %v140 = vld [vmem:[%s1 + $0x1b4] sm:$0xf]
  %v141 = vld [vmem:[%s1 + $0x1b8] sm:$0xf]
  %v142 = vld [vmem:[%s1 + $0x1bc] sm:$0xf]
  %v143 = vld [vmem:[%s1 + $0x1c0] sm:$0xf]
  %v144 = vld [vmem:[%s1 + $0x1c4] sm:$0xf]
  %v145 = vld [vmem:[%s1 + $0x1c8] sm:$0xf]
  %v146 = vld [vmem:[%s1 + $0x1cc] sm:$0xf]
  %v147 = vld [vmem:[%s1 + $0x1d0] sm:$0xf]
  %v148 = vld [vmem:[%s1 + $0x1d4] sm:$0xf]
  %v149 = vld [vmem:[%s1 + $0x1d8] sm:$0xf]
  %v150 = vld [vmem:[%s1 + $0x1dc] sm:$0xf]
  %v151 = vld [vmem:[%s1 + $0x1e0] sm:$0xf]
  %v152 = vld [vmem:[%s1 + $0x1e4] sm:$0xf]
  %v153 = vld [vmem:[%s1 + $0x1e8] sm:$0xf]
  %v154 = vld [vmem:[%s1 + $0x1ec] sm:$0xf]
  %v155 = vld [vmem:[%s1 + $0x1f0] sm:$0xf]
  %v156 = vld [vmem:[%s1 + $0x1f4] sm:$0xf]
  %v157 = vld [vmem:[%s1 + $0x1f8] sm:$0xf]
  %v158 = vld [vmem:[%s1 + $0x1fc] sm:$0xf]
  %v287 = vunpack.c.l.b16 %v31
  %v288 = vunpack.c.l.b16 %v32
  %v289 = vunpack.c.l.b16 %v33
  %v290 = vunpack.c.l.b16 %v34
  %v291 = vunpack.c.l.b16 %v35
  %v292 = vunpack.c.l.b16 %v36
  %v293 = vunpack.c.l.b16 %v37
  %v294 = vunpack.c.l.b16 %v38
  %v295 = vunpack.c.l.b16 %v39
  %v296 = vunpack.c.l.b16 %v40
  %v297 = vunpack.c.l.b16 %v41
  %v298 = vunpack.c.l.b16 %v42
  %v299 = vunpack.c.l.b16 %v43
  %v300 = vunpack.c.l.b16 %v44
  %v301 = vunpack.c.l.b16 %v45
  %v302 = vunpack.c.l.b16 %v46
  %v303 = vunpack.c.l.b16 %v47
  %v304 = vunpack.c.l.b16 %v48
  %v305 = vunpack.c.l.b16 %v49
  %v306 = vunpack.c.l.b16 %v50
  %v307 = vunpack.c.l.b16 %v51
  %v308 = vunpack.c.l.b16 %v52
  %v309 = vunpack.c.l.b16 %v53
  %v310 = vunpack.c.l.b16 %v54
  %v311 = vunpack.c.l.b16 %v55
  %v312 = vunpack.c.l.b16 %v56
  %v313 = vunpack.c.l.b16 %v57
  %v314 = vunpack.c.l.b16 %v58
  %v315 = vunpack.c.l.b16 %v59
  %v316 = vunpack.c.l.b16 %v60
  %v317 = vunpack.c.l.b16 %v61
  %v318 = vunpack.c.l.b16 %v62
  %v319 = vunpack.c.l.b16 %v63
  %v320 = vunpack.c.l.b16 %v64
  %v321 = vunpack.c.l.b16 %v65
  %v322 = vunpack.c.l.b16 %v66
  %v323 = vunpack.c.l.b16 %v67
  %v324 = vunpack.c.l.b16 %v68
  %v325 = vunpack.c.l.b16 %v69
  %v326 = vunpack.c.l.b16 %v70
  %v327 = vunpack.c.l.b16 %v71
  %v328 = vunpack.c.l.b16 %v72
  %v329 = vunpack.c.l.b16 %v73
  %v330 = vunpack.c.l.b16 %v74
  %v331 = vunpack.c.l.b16 %v75
  %v332 = vunpack.c.l.b16 %v76
  %v333 = vunpack.c.l.b16 %v77
  %v334 = vunpack.c.l.b16 %v78
  %v335 = vunpack.c.l.b16 %v79
  %v336 = vunpack.c.l.b16 %v80
  %v337 = vunpack.c.l.b16 %v81
  %v338 = vunpack.c.l.b16 %v82
  %v339 = vunpack.c.l.b16 %v83
  %v340 = vunpack.c.l.b16 %v84
  %v341 = vunpack.c.l.b16 %v85
  %v342 = vunpack.c.l.b16 %v86
  %v343 = vunpack.c.l.b16 %v87
  %v344 = vunpack.c.l.b16 %v88
  %v345 = vunpack.c.l.b16 %v89
  %v346 = vunpack.c.l.b16 %v90
  %v347 = vunpack.c.l.b16 %v91
  %v348 = vunpack.c.l.b16 %v92
  %v349 = vunpack.c.l.b16 %v93
  %v350 = vunpack.c.l.b16 %v94
  %v351 = vunpack.c.l.b16 %v95
  %v352 = vunpack.c.l.b16 %v96
  %v353 = vunpack.c.l.b16 %v97
  %v354 = vunpack.c.l.b16 %v98
  %v355 = vunpack.c.l.b16 %v99
  %v356 = vunpack.c.l.b16 %v100
  %v357 = vunpack.c.l.b16 %v101
  %v358 = vunpack.c.l.b16 %v102
  %v359 = vunpack.c.l.b16 %v103
  %v360 = vunpack.c.l.b16 %v104
  %v361 = vunpack.c.l.b16 %v105
  %v362 = vunpack.c.l.b16 %v106
  %v363 = vunpack.c.l.b16 %v107
  %v364 = vunpack.c.l.b16 %v108
  %v365 = vunpack.c.l.b16 %v109
  %v366 = vunpack.c.l.b16 %v110
  %v367 = vunpack.c.l.b16 %v111
  %v368 = vunpack.c.l.b16 %v112
  %v369 = vunpack.c.l.b16 %v113
  %v370 = vunpack.c.l.b16 %v114
  %v371 = vunpack.c.l.b16 %v115
  %v372 = vunpack.c.l.b16 %v116
  %v373 = vunpack.c.l.b16 %v117
  %v374 = vunpack.c.l.b16 %v118
  %v375 = vunpack.c.l.b16 %v119
  %v376 = vunpack.c.l.b16 %v120
  %v377 = vunpack.c.l.b16 %v121
  %v378 = vunpack.c.l.b16 %v122
  %v379 = vunpack.c.l.b16 %v123
  %v380 = vunpack.c.l.b16 %v124
  %v381 = vunpack.c.l.b16 %v125
  %v382 = vunpack.c.l.b16 %v126
  %v383 = vunpack.c.l.b16 %v127
  %v384 = vunpack.c.l.b16 %v128
  %v385 = vunpack.c.l.b16 %v129
  %v386 = vunpack.c.l.b16 %v130
  %v387 = vunpack.c.l.b16 %v131
  %v388 = vunpack.c.l.b16 %v132
  %v389 = vunpack.c.l.b16 %v133
  %v390 = vunpack.c.l.b16 %v134
  %v391 = vunpack.c.l.b16 %v135
  %v392 = vunpack.c.l.b16 %v136
  %v393 = vunpack.c.l.b16 %v137
  %v394 = vunpack.c.l.b16 %v138
  %v395 = vunpack.c.l.b16 %v139
  %v396 = vunpack.c.l.b16 %v140
  %v397 = vunpack.c.l.b16 %v141
  %v398 = vunpack.c.l.b16 %v142
  %v399 = vunpack.c.l.b16 %v143
  %v400 = vunpack.c.l.b16 %v144
  %v401 = vunpack.c.l.b16 %v145
  %v402 = vunpack.c.l.b16 %v146
  %v403 = vunpack.c.l.b16 %v147
  %v404 = vunpack.c.l.b16 %v148
  %v405 = vunpack.c.l.b16 %v149
  %v406 = vunpack.c.l.b16 %v150
  %v407 = vunpack.c.l.b16 %v151
  %v408 = vunpack.c.l.b16 %v152
  %v409 = vunpack.c.l.b16 %v153
  %v410 = vunpack.c.l.b16 %v154
  %v411 = vunpack.c.l.b16 %v155
  %v412 = vunpack.c.l.b16 %v156
  %v413 = vunpack.c.l.b16 %v157
  %v414 = vunpack.c.l.b16 %v158
  %v415 = vpack.c.b16 %v288, %v287
  %v416 = vpack.c.b16 %v290, %v289
  %v417 = vpack.c.b16 %v292, %v291
  %v418 = vpack.c.b16 %v294, %v293
  %v419 = vpack.c.b16 %v296, %v295
  %v420 = vpack.c.b16 %v298, %v297
  %v421 = vpack.c.b16 %v300, %v299
  %v422 = vpack.c.b16 %v302, %v301
  %v423 = vpack.c.b16 %v304, %v303
  %v424 = vpack.c.b16 %v306, %v305
  %v425 = vpack.c.b16 %v308, %v307
  %v426 = vpack.c.b16 %v310, %v309
  %v427 = vpack.c.b16 %v312, %v311
  %v428 = vpack.c.b16 %v314, %v313
  %v429 = vpack.c.b16 %v316, %v315
  %v430 = vpack.c.b16 %v318, %v317
  %v431 = vpack.c.b16 %v320, %v319
  %v432 = vpack.c.b16 %v322, %v321
  %v433 = vpack.c.b16 %v324, %v323
  %v434 = vpack.c.b16 %v326, %v325
  %v435 = vpack.c.b16 %v328, %v327
  %v436 = vpack.c.b16 %v330, %v329
  %v437 = vpack.c.b16 %v332, %v331
  %v438 = vpack.c.b16 %v334, %v333
  %v439 = vpack.c.b16 %v336, %v335
  %v440 = vpack.c.b16 %v338, %v337
  %v441 = vpack.c.b16 %v340, %v339
  %v442 = vpack.c.b16 %v342, %v341
  %v443 = vpack.c.b16 %v344, %v343
  %v444 = vpack.c.b16 %v346, %v345
  %v445 = vpack.c.b16 %v348, %v347
  %v446 = vpack.c.b16 %v350, %v349
  %v447 = vpack.c.b16 %v352, %v351
  %v448 = vpack.c.b16 %v354, %v353
  %v449 = vpack.c.b16 %v356, %v355
  %v450 = vpack.c.b16 %v358, %v357
  %v451 = vpack.c.b16 %v360, %v359
  %v452 = vpack.c.b16 %v362, %v361
  %v453 = vpack.c.b16 %v364, %v363
  %v454 = vpack.c.b16 %v366, %v365
  %v455 = vpack.c.b16 %v368, %v367
  %v456 = vpack.c.b16 %v370, %v369
  %v457 = vpack.c.b16 %v372, %v371
  %v458 = vpack.c.b16 %v374, %v373
  %v459 = vpack.c.b16 %v376, %v375
  %v460 = vpack.c.b16 %v378, %v377
  %v461 = vpack.c.b16 %v380, %v379
  %v462 = vpack.c.b16 %v382, %v381
  %v463 = vpack.c.b16 %v384, %v383
  %v464 = vpack.c.b16 %v386, %v385
  %v465 = vpack.c.b16 %v388, %v387
  %v466 = vpack.c.b16 %v390, %v389
  %v467 = vpack.c.b16 %v392, %v391
  %v468 = vpack.c.b16 %v394, %v393
  %v469 = vpack.c.b16 %v396, %v395
  %v470 = vpack.c.b16 %v398, %v397
  %v471 = vpack.c.b16 %v400, %v399
  %v472 = vpack.c.b16 %v402, %v401
  %v473 = vpack.c.b16 %v404, %v403
  %v474 = vpack.c.b16 %v406, %v405
  %v475 = vpack.c.b16 %v408, %v407
  %v476 = vpack.c.b16 %v410, %v409
  %v477 = vpack.c.b16 %v412, %v411
  %v478 = vpack.c.b16 %v414, %v413
  %543 = vmatprep.subr.bf16.mxu0 0
  %544 = vmatpush1.bf16.msra.mxu0 %v415
  %545 = vmatprep.subr.bf16.mxu0 0
  %546 = vmatpush1.bf16.msra.mxu0 %v416
  %547 = vmatprep.subr.bf16.mxu0 0
  %548 = vmatpush1.bf16.msra.mxu0 %v417
  %549 = vmatprep.subr.bf16.mxu0 0
  %550 = vmatpush1.bf16.msra.mxu0 %v418
  %551 = vmatprep.subr.bf16.mxu0 0
  %552 = vmatpush1.bf16.msra.mxu0 %v419
  %553 = vmatprep.subr.bf16.mxu0 0
  %554 = vmatpush1.bf16.msra.mxu0 %v420
  %555 = vmatprep.subr.bf16.mxu0 0
  %556 = vmatpush1.bf16.msra.mxu0 %v421
  %557 = vmatprep.subr.bf16.mxu0 0
  %558 = vmatpush1.bf16.msra.mxu0 %v422
  %559 = vmatprep.subr.bf16.mxu0 0
  %560 = vmatpush1.bf16.msra.mxu0 %v423
  %561 = vmatprep.subr.bf16.mxu0 0
  %562 = vmatpush1.bf16.msra.mxu0 %v424
  %563 = vmatprep.subr.bf16.mxu0 0
  %564 = vmatpush1.bf16.msra.mxu0 %v425
  %565 = vmatprep.subr.bf16.mxu0 0
  %566 = vmatpush1.bf16.msra.mxu0 %v426
  %567 = vmatprep.subr.bf16.mxu0 0
  %568 = vmatpush1.bf16.msra.mxu0 %v427
  %569 = vmatprep.subr.bf16.mxu0 0
  %570 = vmatpush1.bf16.msra.mxu0 %v428
  %571 = vmatprep.subr.bf16.mxu0 0
  %572 = vmatpush1.bf16.msra.mxu0 %v429
  %573 = vmatprep.subr.bf16.mxu0 0
  %574 = vmatpush1.bf16.msra.mxu0 %v430
  %575 = vmatprep.mubr.bf16.mxu0 %v24
  %576 = vmatmul.mubr.bf16.gmra.mrb[0].mxu0 %v23
  %v577 = vpop.f32.mrb[0].mxu0
  %v578 = vadd.f32 0.0, %v577
  %v579 = vpop.f32.mrb[0].mxu0
  %v580 = vpop.f32.mrb[0].mxu0
  %v581 = vpop.f32.mrb[0].mxu0
  %582 = vdwg.mxu0
  %583 = vmatprep.subr.bf16.mxu0 0
  %584 = vmatpush1.bf16.msra.mxu0 %v431
  %585 = vmatprep.subr.bf16.mxu0 0
  %586 = vmatpush1.bf16.msra.mxu0 %v432
  %587 = vmatprep.subr.bf16.mxu0 0
  %588 = vmatpush1.bf16.msra.mxu0 %v433
  %589 = vmatprep.subr.bf16.mxu0 0
  %590 = vmatpush1.bf16.msra.mxu0 %v434
  %591 = vmatprep.subr.bf16.mxu0 0
  %592 = vmatpush1.bf16.msra.mxu0 %v435
  %593 = vmatprep.subr.bf16.mxu0 0
  %594 = vmatpush1.bf16.msra.mxu0 %v436
  %595 = vmatprep.subr.bf16.mxu0 0
  %596 = vmatpush1.bf16.msra.mxu0 %v437
  %597 = vmatprep.subr.bf16.mxu0 0
  %598 = vmatpush1.bf16.msra.mxu0 %v438
  %599 = vmatprep.subr.bf16.mxu0 0
  %600 = vmatpush1.bf16.msra.mxu0 %v439
  %601 = vmatprep.subr.bf16.mxu0 0
  %602 = vmatpush1.bf16.msra.mxu0 %v440
  %603 = vmatprep.subr.bf16.mxu0 0
  %604 = vmatpush1.bf16.msra.mxu0 %v441
  %605 = vmatprep.subr.bf16.mxu0 0
  %606 = vmatpush1.bf16.msra.mxu0 %v442
  %607 = vmatprep.subr.bf16.mxu0 0
  %608 = vmatpush1.bf16.msra.mxu0 %v443
  %609 = vmatprep.subr.bf16.mxu0 0
  %610 = vmatpush1.bf16.msra.mxu0 %v444
  %611 = vmatprep.subr.bf16.mxu0 0
  %612 = vmatpush1.bf16.msra.mxu0 %v445
  %613 = vmatprep.subr.bf16.mxu0 0
  %614 = vmatpush1.bf16.msra.mxu0 %v446
  %615 = vmatprep.mubr.bf16.mxu0 %v26
  %616 = vmatmul.mubr.bf16.gmra.mrb[0].mxu0 %v25
  %v617 = vpop.f32.mrb[0].mxu0
  %v618 = vadd.f32 %v578, %v617
  %v619 = vpop.f32.mrb[0].mxu0
  %v620 = vpop.f32.mrb[0].mxu0
  %v621 = vpop.f32.mrb[0].mxu0
  %622 = vdwg.mxu0
  %623 = vmatprep.subr.bf16.mxu0 0
  %624 = vmatpush1.bf16.msra.mxu0 %v447
  %625 = vmatprep.subr.bf16.mxu0 0
  %626 = vmatpush1.bf16.msra.mxu0 %v448
  %627 = vmatprep.subr.bf16.mxu0 0
  %628 = vmatpush1.bf16.msra.mxu0 %v449
  %629 = vmatprep.subr.bf16.mxu0 0
  %630 = vmatpush1.bf16.msra.mxu0 %v450
  %631 = vmatprep.subr.bf16.mxu0 0
  %632 = vmatpush1.bf16.msra.mxu0 %v451
  %633 = vmatprep.subr.bf16.mxu0 0
  %634 = vmatpush1.bf16.msra.mxu0 %v452
  %635 = vmatprep.subr.bf16.mxu0 0
  %636 = vmatpush1.bf16.msra.mxu0 %v453
  %637 = vmatprep.subr.bf16.mxu0 0
  %638 = vmatpush1.bf16.msra.mxu0 %v454
  %639 = vmatprep.subr.bf16.mxu0 0
  %640 = vmatpush1.bf16.msra.mxu0 %v455
  %641 = vmatprep.subr.bf16.mxu0 0
  %642 = vmatpush1.bf16.msra.mxu0 %v456
  %643 = vmatprep.subr.bf16.mxu0 0
  %644 = vmatpush1.bf16.msra.mxu0 %v457
  %645 = vmatprep.subr.bf16.mxu0 0
  %646 = vmatpush1.bf16.msra.mxu0 %v458
  %647 = vmatprep.subr.bf16.mxu0 0
  %648 = vmatpush1.bf16.msra.mxu0 %v459
  %649 = vmatprep.subr.bf16.mxu0 0
  %650 = vmatpush1.bf16.msra.mxu0 %v460
  %651 = vmatprep.subr.bf16.mxu0 0
  %652 = vmatpush1.bf16.msra.mxu0 %v461
  %653 = vmatprep.subr.bf16.mxu0 0
  %654 = vmatpush1.bf16.msra.mxu0 %v462
  %655 = vmatprep.mubr.bf16.mxu0 %v28
  %656 = vmatmul.mubr.bf16.gmra.mrb[0].mxu0 %v27
  %v657 = vpop.f32.mrb[0].mxu0
  %v658 = vadd.f32 %v618, %v657
  %v659 = vpop.f32.mrb[0].mxu0
  %v660 = vpop.f32.mrb[0].mxu0
  %v661 = vpop.f32.mrb[0].mxu0
  %662 = vdwg.mxu0
  %663 = vmatprep.subr.bf16.mxu0 0
  %664 = vmatpush1.bf16.msra.mxu0 %v463
  %665 = vmatprep.subr.bf16.mxu0 0
  %666 = vmatpush1.bf16.msra.mxu0 %v464
  %667 = vmatprep.subr.bf16.mxu0 0
  %668 = vmatpush1.bf16.msra.mxu0 %v465
  %669 = vmatprep.subr.bf16.mxu0 0
  %670 = vmatpush1.bf16.msra.mxu0 %v466
  %671 = vmatprep.subr.bf16.mxu0 0
  %672 = vmatpush1.bf16.msra.mxu0 %v467
  %673 = vmatprep.subr.bf16.mxu0 0
  %674 = vmatpush1.bf16.msra.mxu0 %v468
  %675 = vmatprep.subr.bf16.mxu0 0
  %676 = vmatpush1.bf16.msra.mxu0 %v469
  %677 = vmatprep.subr.bf16.mxu0 0
  %678 = vmatpush1.bf16.msra.mxu0 %v470
  %679 = vmatprep.subr.bf16.mxu0 0
  %680 = vmatpush1.bf16.msra.mxu0 %v471
  %681 = vmatprep.subr.bf16.mxu0 0
  %682 = vmatpush1.bf16.msra.mxu0 %v472
  %683 = vmatprep.subr.bf16.mxu0 0
  %684 = vmatpush1.bf16.msra.mxu0 %v473
  %685 = vmatprep.subr.bf16.mxu0 0
  %686 = vmatpush1.bf16.msra.mxu0 %v474
  %687 = vmatprep.subr.bf16.mxu0 0
  %688 = vmatpush1.bf16.msra.mxu0 %v475
  %689 = vmatprep.subr.bf16.mxu0 0
  %690 = vmatpush1.bf16.msra.mxu0 %v476
  %691 = vmatprep.subr.bf16.mxu0 0
  %692 = vmatpush1.bf16.msra.mxu0 %v477
  %693 = vmatprep.subr.bf16.mxu0 0
  %694 = vmatpush1.bf16.msra.mxu0 %v478
  %695 = vmatprep.mubr.bf16.mxu0 %v30
  %696 = vmatmul.mubr.bf16.gmra.mrb[0].mxu0 %v29
  %v697 = vpop.f32.mrb[0].mxu0
  %v698 = vadd.f32 %v658, %v697
  %v699 = vpop.f32.mrb[0].mxu0
  %v700 = vpop.f32.mrb[0].mxu0
  %v701 = vpop.f32.mrb[0].mxu0
  %702 = vdwg.mxu0
  %vm703 = vcmp.ge.f32.partialorder %v698, 0.0
  %v704 = vmul.f32 %v698, 0.01
  %v705 = vsel %vm703, %v698, %v704
  %v706 = vld [vmem:[%s2] sm:$0xff]
  %v707 = vld [vmem:[%s2 + $0x8] sm:$0xff]
  %v708 = vld [vmem:[%s2 + $0x10] sm:$0xff]
  %v709 = vld [vmem:[%s2 + $0x18] sm:$0xff]
  %v710 = vld [vmem:[%s2 + $0x20] sm:$0xff]
  %v711 = vld [vmem:[%s2 + $0x28] sm:$0xff]
  %v712 = vld [vmem:[%s2 + $0x30] sm:$0xff]
  %v713 = vld [vmem:[%s2 + $0x38] sm:$0xff]
  %vm714 = vcmask 523264
  %v716 = vsel %vm714, %v705, 0
  %718 = vmatprep.subr.mxu0 0.0
  %719 = vmatpush1.msra.mxu0 %v706
  %720 = vmatprep.subr.mxu0 0.0
  %721 = vmatpush1.msra.mxu0 %v707
  %722 = vmatprep.subr.mxu0 0.0
  %723 = vmatpush1.msra.mxu0 %v708
  %724 = vmatprep.subr.mxu0 0.0
  %725 = vmatpush1.msra.mxu0 %v709
  %726 = vmatprep.subr.mxu0 0.0
  %727 = vmatpush1.msra.mxu0 %v710
  %728 = vmatprep.subr.mxu0 0.0
  %729 = vmatpush1.msra.mxu0 %v711
  %730 = vmatprep.subr.mxu0 0.0
  %731 = vmatpush1.msra.mxu0 %v712
  %732 = vmatprep.subr.mxu0 0.0
  %733 = vmatpush1.msra.mxu0 %v713
  %734 = vmatprep.subr.mxu0 0.0
  %735 = vmatpush1.msra.mxu0 0.0
  %736 = vmatprep.subr.mxu0 0.0
  %737 = vmatpush1.msra.mxu0 0.0
  %738 = vmatprep.subr.mxu0 0.0
  %739 = vmatpush1.msra.mxu0 0.0
  %740 = vmatprep.subr.mxu0 0.0
  %741 = vmatpush1.msra.mxu0 0.0
  %742 = vmatprep.subr.mxu0 0.0
  %743 = vmatpush1.msra.mxu0 0.0
  %744 = vmatprep.subr.mxu0 0.0
  %745 = vmatpush1.msra.mxu0 0.0
  %746 = vmatprep.subr.mxu0 0.0
  %747 = vmatpush1.msra.mxu0 0.0
  %748 = vmatprep.subr.mxu0 0.0
  %749 = vmatpush1.msra.mxu0 0.0
  %750 = vmatprep.subr.mxu0 0.0
  %751 = vmatpush1.msra.mxu0 0.0
  %752 = vmatprep.subr.mxu0 0.0
  %753 = vmatpush1.msra.mxu0 0.0
  %754 = vmatprep.subr.mxu0 0.0
  %755 = vmatpush1.msra.mxu0 0.0
  %756 = vmatprep.subr.mxu0 0.0
  %757 = vmatpush1.msra.mxu0 0.0
  %758 = vmatprep.subr.mxu0 0.0
  %759 = vmatpush1.msra.mxu0 0.0
  %760 = vmatprep.subr.mxu0 0.0
  %761 = vmatpush1.msra.mxu0 0.0
  %762 = vmatprep.subr.mxu0 0.0
  %763 = vmatpush1.msra.mxu0 0.0
  %764 = vmatprep.subr.mxu0 0.0
  %765 = vmatpush1.msra.mxu0 0.0
  %766 = vmatprep.subr.mxu0 0.0
  %767 = vmatpush1.msra.mxu0 0.0
  %768 = vmatprep.subr.mxu0 0.0
  %769 = vmatpush1.msra.mxu0 0.0
  %770 = vmatprep.subr.mxu0 0.0
  %771 = vmatpush1.msra.mxu0 0.0
  %772 = vmatprep.subr.mxu0 0.0
  %773 = vmatpush1.msra.mxu0 0.0
  %774 = vmatprep.subr.mxu0 0.0
  %775 = vmatpush1.msra.mxu0 0.0
  %776 = vmatprep.subr.mxu0 0.0
  %777 = vmatpush1.msra.mxu0 0.0
  %778 = vmatprep.subr.mxu0 0.0
  %779 = vmatpush1.msra.mxu0 0.0
  %780 = vmatprep.subr.mxu0 0.0
  %781 = vmatpush1.msra.mxu0 0.0
  %782 = vmatprep.mubr.f32.mxu0 0.0
  %783 = vmatmul.mubr.f32.gmra.mrb[0].mxu0 %v716
  %v784 = vpop.f32.mrb[0].mxu0
  %v785 = vadd.f32 0.0, %v784
  %v786 = vpop.f32.mrb[0].mxu0
  %787 = vdwg.mxu0
  %788 = vst [vmem:[%s3] sm:$0xff] %v785
  // Predicated region
  $region14: #{mlp_forward.1} parent=0 // pred_check
    _
  $region15: #{mlp_forward.1} parent=0 // pred_check_branch
    %790 = sbr.rel (0) target = $region17
  $region16: #{mlp_forward.1} parent=0 // pred_region
    _
  $region17: #{mlp_forward.1} parent=0 // pred_fallthru
    _
  // Predicated region
  $region18: #{mlp_forward.1} parent=0 // pred_check
    _
  $region19: #{mlp_forward.1} parent=0 // pred_check_branch
    %792 = sbr.rel (0) target = $region21
  $region20: #{mlp_forward.1} parent=0 // pred_region
    _
  $region21: #{mlp_forward.1} parent=0 // pred_fallthru
    _

</llo_original>
